<compile_context>
chip_gen: v6e
topology: v6e:2x2x1
jax: 0.10.0
libtpu: 0.0.40
codegen_flags: <defaults>
</compile_context>

<pallas_src>
import functools

import jax
import jax.numpy as jnp
import numpy as np
from jax.experimental import pallas as pl
from jax.experimental.pallas import tpu as pltpu


def _cdiv(a, b):
    return -(-a // b)


# --------------------------------------------------------------------------
# Parameter fusion: run ONCE, outside the traced hot path.
# --------------------------------------------------------------------------
def fuse_mix_params(params):
    """Fuse upper/lower 1x1-conv weights into MXU-friendly operands.

    w1: (C, 2Cr)   cols [:Cr] = w1u^T, cols [Cr:] = w1l^T
    b1: (1, 2Cr)   [b1u ; b1l]
    w2: (2Cr, 2C)  block-diagonal: [:Cr, :C] = w2u^T, [Cr:, C:] = w2l^T, 0 else
    b2: (1, 2C)    [b2u ; b2l]
    """
    f32 = jnp.float32
    w1u_t = params["w1u"].T.astype(f32)          # (C, Cr)
    w1l_t = params["w1l"].T.astype(f32)
    w2u_t = params["w2u"].T.astype(f32)          # (Cr, C)
    w2l_t = params["w2l"].T.astype(f32)
    zer = jnp.zeros_like(w2u_t)
    return {
        "w1": jnp.concatenate([w1u_t, w1l_t], axis=1),
        "b1": jnp.concatenate([params["b1u"], params["b1l"]], axis=0)
                 .reshape(1, -1).astype(f32),
        "w2": jnp.concatenate(
            [jnp.concatenate([w2u_t, zer], axis=1),
             jnp.concatenate([zer, w2l_t], axis=1)], axis=0),
        "b2": jnp.concatenate([params["b2u"], params["b2l"]], axis=0)
                 .reshape(1, -1).astype(f32),
    }


# --------------------------------------------------------------------------
# Single-pass kernel: whole (bt, C, HW) slab per grid step.
# --------------------------------------------------------------------------
def _mix_kernel(x_ref, w1_ref, b1_ref, w2_ref, b2_ref, o_ref, *, bt, c, inv_hw):
    # f32 stats regardless of I/O dtype (accuracy; v5e has no bf16 VPU).
    # Single fused sweep: sum and sum-of-squares; var = E[x^2]-mean^2 clamped
    # at 0 (no second (x-mean)^2 pass over the slab).
    xf = x_ref[...].astype(jnp.float32)                       # (bt, C, HW)
    s1 = jnp.sum(xf, axis=2)                                  # (bt, C)
    s2 = jnp.sum(xf * xf, axis=2)                             # (bt, C)
    mean = s1 * inv_hw
    var = jnp.maximum(s2 * inv_hw - mean * mean, 0.0)
    stdv = jnp.sqrt(var)

    # Both SE branches with a single matmul pair; w2 is block-diagonal so the
    # cross terms vanish and no slicing/concat is needed between the matmuls.
    stats = jnp.concatenate([mean, stdv], axis=0)             # (2bt, C)
    h = jnp.maximum(
        jnp.dot(stats, w1_ref[...], preferred_element_type=jnp.float32)
        + b1_ref[...], 0.0)                                   # (2bt, 2Cr)
    logits = jnp.dot(h, w2_ref[...],
                     preferred_element_type=jnp.float32)      # (2bt, 2C)

    # Slice to the two valid blocks BEFORE the sigmoid (halves EUP work).
    gu = jax.nn.sigmoid(logits[:bt, :c] + b2_ref[:, :c])      # upper gate
    gl = jax.nn.sigmoid(logits[bt:, c:] + b2_ref[:, c:])      # lower gate
    y = (gu + gl) * 0.5                                       # (bt, C) f32

    # Gate natively in the I/O dtype (no f32 product temp on bf16).
    o_ref[...] = (x_ref[...] * y.astype(o_ref.dtype)[:, :, None]
                  ).astype(o_ref.dtype)


# --------------------------------------------------------------------------
# Two-pass fallback kernels (HW tiled) for slabs that don't fit VMEM.
# --------------------------------------------------------------------------
def _stats_kernel(x_ref, s1_ref, s2_ref, *, hw_tile, hw):
    hstep = pl.program_id(1)

    @pl.when(hstep == 0)
    def _():
        s1_ref[...] = jnp.zeros_like(s1_ref)
        s2_ref[...] = jnp.zeros_like(s2_ref)

    xf = x_ref[...].astype(jnp.float32)                       # (1, C, hw_tile)
    # Mask the ragged last chunk (OOB lanes of an input block are undefined).
    lane = jax.lax.broadcasted_iota(jnp.int32, xf.shape, 2) + hstep * hw_tile
    xf = jnp.where(lane < hw, xf, 0.0)
    s1_ref[...] += jnp.sum(xf, axis=2)[:, None, :]            # (1, 1, C)
    s2_ref[...] += jnp.sum(xf * xf, axis=2)[:, None, :]


def _apply_kernel(s1_ref, s2_ref, w1_ref, b1_ref, w2_ref, b2_ref, x_ref,
                  o_ref, gate_ref, *, c, inv_hw):
    hstep = pl.program_id(1)

    @pl.when(hstep == 0)
    def _():
        mean = s1_ref[0] * inv_hw                             # (1, C)
        var = jnp.maximum(s2_ref[0] * inv_hw - mean * mean, 0.0)
        stdv = jnp.sqrt(var)
        stats = jnp.concatenate([mean, stdv], axis=0)         # (2, C)
        h = jnp.maximum(
            jnp.dot(stats, w1_ref[...], preferred_element_type=jnp.float32)
            + b1_ref[...], 0.0)
        logits = jnp.dot(h, w2_ref[...], preferred_element_type=jnp.float32)
        gu = jax.nn.sigmoid(logits[:1, :c] + b2_ref[:, :c])
        gl = jax.nn.sigmoid(logits[1:, c:] + b2_ref[:, c:])
        gate_ref[...] = (gu + gl) * 0.5                       # (1, C) f32

    y = gate_ref[...]
    o_ref[...] = (x_ref[...] * y.astype(o_ref.dtype)[:, None if False else slice(None), None][:, :, 0][:, :, None]
                  ).astype(o_ref.dtype) if False else (
        x_ref[...] * y.astype(o_ref.dtype)[:, :, None]).astype(o_ref.dtype)


# --------------------------------------------------------------------------
# VMEM budgeting (generation aware).
# --------------------------------------------------------------------------
def _vmem_budget(budget_override=None, limit_override=None):
    try:
        cap = int(getattr(pltpu.get_tpu_info(), "vmem_capacity_bytes",
                          64 * 1024 * 1024))
    except Exception:
        cap = 64 * 1024 * 1024   # conservative: v7x per-TensorCore VMEM
    limit = limit_override if limit_override is not None else \
        min((cap * 3) // 4, 96 * 1024 * 1024)        # 96 MiB v5e/v6e, 48 MiB v7x
    budget = budget_override if budget_override is not None else limit // 2
    return int(budget), int(limit)


# --------------------------------------------------------------------------
# Wrappers.
# --------------------------------------------------------------------------
def _mix_layer_two_pass(x_flat, w1, b1, w2, b2, C, HW, dtype, itemsize,
                        budget, limit, inv_hw):
    B = x_flat.shape[0]
    # Per-lane VMEM cost: double-buffered in+out tiles + f32 temporaries.
    per_lane = C * (4 * itemsize + 2 * 4)
    hw_tile = max(128, (budget // per_lane) // 128 * 128)
    if hw_tile >= HW:
        hw_tile, nhw = HW, 1            # full-dim lane block (always legal)
    else:
        nhw = _cdiv(HW, hw_tile)

    full = lambda a: pl.BlockSpec(a.shape, lambda b, h: (0,) * a.ndim)
    cparams = pltpu.CompilerParams(
        dimension_semantics=("parallel", "arbitrary"),
        vmem_limit_bytes=limit)

    # Pass 1: accumulate sum / sum-of-squares per (b, c) across HW chunks.
    s1, s2 = pl.pallas_call(
        functools.partial(_stats_kernel, hw_tile=hw_tile, hw=HW),
        out_shape=(jax.ShapeDtypeStruct((B, 1, C), jnp.float32),
                   jax.ShapeDtypeStruct((B, 1, C), jnp.float32)),
        grid_spec=pltpu.PrefetchScalarGridSpec(
            num_scalar_prefetch=0,
            grid=(B, nhw),
            in_specs=[pl.BlockSpec((1, C, hw_tile), lambda b, h: (b, 0, h))],
            out_specs=(pl.BlockSpec((1, 1, C), lambda b, h: (b, 0, 0)),
                       pl.BlockSpec((1, 1, C), lambda b, h: (b, 0, 0))),
        ),
        compiler_params=cparams,
    )(x_flat)

    # Pass 2: compute the SE gate once per batch element (hw step 0, kept in
    # VMEM scratch) and re-stream x in chunks to apply it.
    out = pl.pallas_call(
        functools.partial(_apply_kernel, c=C, inv_hw=inv_hw),
        out_shape=jax.ShapeDtypeStruct((B, C, HW), dtype),
        grid_spec=pltpu.PrefetchScalarGridSpec(
            num_scalar_prefetch=0,
            grid=(B, nhw),
            in_specs=[pl.BlockSpec((1, 1, C), lambda b, h: (b, 0, 0)),
                      pl.BlockSpec((1, 1, C), lambda b, h: (b, 0, 0)),
                      full(w1), full(b1), full(w2), full(b2),
                      pl.BlockSpec((1, C, hw_tile), lambda b, h: (b, 0, h))],
            out_specs=pl.BlockSpec((1, C, hw_tile), lambda b, h: (b, 0, h)),
            scratch_shapes=[pltpu.VMEM((1, C), jnp.float32)],
        ),
        compiler_params=cparams,
    )(s1, s2, w1, b1, w2, b2, x_flat)
    return out


def mix_layer(x, params, *, force_two_pass=False,
              vmem_budget_bytes=None, vmem_limit_bytes=None):
    """x: (B, C, H, W). params: raw PyTorch-layout weights or fused params."""
    B, C, H, W = x.shape
    HW = H * W
    dtype = x.dtype
    itemsize = jnp.dtype(dtype).itemsize
    inv_hw = 1.0 / float(HW)

    fused = params if "w1" in params else fuse_mix_params(params)
    w1, b1, w2, b2 = fused["w1"], fused["b1"], fused["w2"], fused["b2"]

    budget, limit = _vmem_budget(vmem_budget_bytes, vmem_limit_bytes)

    # Per-batch-element VMEM cost of the single-pass kernel: double-buffered
    # in/out tiles + in-kernel f32 temporaries (cast / x*x sweep).
    per_b = 4 * C * HW * itemsize + 2 * C * HW * 4

    # No host-side pads or slices: reshape is metadata-only (contiguous).
    x_flat = x.reshape(B, C, HW)

    if force_two_pass or per_b > budget:
        out = _mix_layer_two_pass(x_flat, w1, b1, w2, b2, C, HW, dtype,
                                  itemsize, budget, limit, inv_hw)
        return out.reshape(B, C, H, W)

    # Batch tile: largest bt fitting the budget, then round so the grid-step
    # count is even when B allows (v7x megacore balance; >=2 steps pipelining).
    bt = max(1, min(budget // per_b, B))
    nsteps = _cdiv(B, bt)
    if B >= 2 and nsteps % 2 == 1:
        bt = _cdiv(B, nsteps + 1)
        nsteps = _cdiv(B, bt)

    kernel = functools.partial(_mix_kernel, bt=bt, c=C, inv_hw=inv_hw)
    full = lambda a: pl.BlockSpec(a.shape, lambda b: (0,) * a.ndim)

    out = pl.pallas_call(
        kernel,
        out_shape=jax.ShapeDtypeStruct((B, C, HW), dtype),
        grid_spec=pltpu.PrefetchScalarGridSpec(
            num_scalar_prefetch=0,
            grid=(nsteps,),
            in_specs=[pl.BlockSpec((bt, C, HW), lambda b: (b, 0, 0)),
                      full(w1), full(b1), full(w2), full(b2)],
            out_specs=pl.BlockSpec((bt, C, HW), lambda b: (b, 0, 0)),
        ),
        compiler_params=pltpu.CompilerParams(
            dimension_semantics=("parallel",),
            vmem_limit_bytes=limit),
    )(x_flat, w1, b1, w2, b2)

    return out.reshape(B, C, H, W)


# --------------------------------------------------------------------------
# Deterministic init + pure-JAX reference (PyTorch forward semantics).
# --------------------------------------------------------------------------
def make_params(key, num_fea, reduction):
    Cr = num_fea // reduction
    ks = jax.random.split(key, 8)
    s1 = 1.0 / np.sqrt(num_fea)
    s2 = 1.0 / np.sqrt(Cr)
    return {
        "w1u": jax.random.uniform(ks[0], (Cr, num_fea), jnp.float32, -s1, s1),
        "b1u": jax.random.uniform(ks[1], (Cr,), jnp.float32, -s1, s1),
        "w2u": jax.random.uniform(ks[2], (num_fea, Cr), jnp.float32, -s2, s2),
        "b2u": jax.random.uniform(ks[3], (num_fea,), jnp.float32, -s2, s2),
        "w1l": jax.random.uniform(ks[4], (Cr, num_fea), jnp.float32, -s1, s1),
        "b1l": jax.random.uniform(ks[5], (Cr,), jnp.float32, -s1, s1),
        "w2l": jax.random.uniform(ks[6], (num_fea, Cr), jnp.float32, -s2, s2),
        "b2l": jax.random.uniform(ks[7], (num_fea,), jnp.float32, -s2, s2),
    }


def mix_layer_ref(x, p):
    B, C, H, W = x.shape
    hw = H * W
    xf = x.astype(jnp.float32)
    mean = jnp.sum(xf, axis=(2, 3), keepdims=True) / hw
    var = jnp.sum((xf - mean) ** 2, axis=(2, 3), keepdims=True) / hw
    stdv = jnp.sqrt(var)

    def branch(v, w1, b1, w2, b2):
        v = v[:, :, 0, 0]
        h = jnp.maximum(v @ w1.T + b1, 0.0)
        o = jax.nn.sigmoid(h @ w2.T + b2)
        return o[:, :, None, None]

    u = branch(mean, p["w1u"], p["b1u"], p["w2u"], p["b2u"])
    l = branch(stdv, p["w1l"], p["b1l"], p["w2l"], p["b2l"])
    return xf * ((u + l) / 2)


if __name__ == "__main__":
    key = jax.random.PRNGKey(0)
    kx, kp, kx2, kx3 = jax.random.split(key, 4)

    # --- main test: num_fea=64, reduction=16 -> Cr=4, 16x16 spatial ---
    B, C, H, W = 2, 64, 16, 16
    params = make_params(kp, C, 16)
    fused = fuse_mix_params(params)          # weight fusion hoisted: run once
    x = jax.random.normal(kx, (B, C, H, W), jnp.float32)

    out = jax.block_until_ready(mix_layer(x, fused))
    ref = mix_layer_ref(x, params)
    np.testing.assert_allclose(np.asarray(out), np.asarray(ref),
                               rtol=1e-4, atol=1e-5)

    # --- ragged batch + non-multiple-of-128 spatial (no host-side pad/slice) ---
    x2 = jax.random.normal(kx2, (3, C, 7, 7), jnp.float32)
    out2 = jax.block_until_ready(mix_layer(x2, fused))
    np.testing.assert_allclose(np.asarray(out2),
                               np.asarray(mix_layer_ref(x2, params)),
                               rtol=1e-4, atol=1e-5)

    # --- bf16 I/O path (halved HBM traffic; stats stay f32, gate in bf16) ---
    xb = x.astype(jnp.bfloat16)
    outb = jax.block_until_ready(mix_layer(xb, fused))
    np.testing.assert_allclose(np.asarray(outb, dtype=np.float32),
                               np.asarray(ref), rtol=5e-2, atol=5e-2)

    # --- two-pass HW-tiled fallback, forced with a tiny budget so multiple
    #     HW chunks and a ragged (masked) last chunk are exercised ---
    x3 = jax.random.normal(kx3, (2, C, 20, 20), jnp.float32)
    out3 = jax.block_until_ready(
        mix_layer(x3, fused, force_two_pass=True,
                  vmem_budget_bytes=C * 24 * 128))
    np.testing.assert_allclose(np.asarray(out3),
                               np.asarray(mix_layer_ref(x3, params)),
                               rtol=1e-4, atol=1e-5)

    print("KERNEL_OK")
</pallas_src>

<mosaic_0001>
module attributes {stable_mosaic.version = 11 : i64} {
  func.func @_mix_kernel(%arg0: i32, %arg1: memref<1x64x256xf32, #tpu.memory_space<vmem>>, %arg2: memref<64x8xf32, #tpu.memory_space<vmem>>, %arg3: memref<1x8xf32, #tpu.memory_space<vmem>>, %arg4: memref<8x128xf32, #tpu.memory_space<vmem>>, %arg5: memref<1x128xf32, #tpu.memory_space<vmem>>, %arg6: memref<1x64x256xf32, #tpu.memory_space<vmem>>) attributes {dimension_semantics = [#tpu.dimension_semantics<parallel>], iteration_bounds = array<i64: 2>, scalar_prefetch = 0 : i64, scratch_operands = 0 : i64, tpu.core_type = #tpu.core_type<tc>, window_params = [{transform_indices = @transform_0, window_bounds = array<i64: 1, 64, 256>}, {pipeline_mode = #tpu.pipeline_mode<synchronous>, transform_indices = @transform_1, window_bounds = array<i64: 64, 8>}, {pipeline_mode = #tpu.pipeline_mode<synchronous>, transform_indices = @transform_2, window_bounds = array<i64: 1, 8>}, {pipeline_mode = #tpu.pipeline_mode<synchronous>, transform_indices = @transform_3, window_bounds = array<i64: 8, 128>}, {pipeline_mode = #tpu.pipeline_mode<synchronous>, transform_indices = @transform_4, window_bounds = array<i64: 1, 128>}, {transform_indices = @transform_5, window_bounds = array<i64: 1, 64, 256>}]} {
    %c0 = arith.constant 0 : index
    %c0_0 = arith.constant 0 : index
    %c0_1 = arith.constant 0 : index
    %0 = vector.load %arg1[%c0, %c0_0, %c0_1] : memref<1x64x256xf32, #tpu.memory_space<vmem>>, vector<1x64x256xf32>
    %cst = arith.constant dense<0.000000e+00> : vector<1x64xf32>
    %1 = vector.multi_reduction <add>, %0, %cst [2] : vector<1x64x256xf32> to vector<1x64xf32>
    %2 = arith.mulf %0, %0 : vector<1x64x256xf32>
    %cst_2 = arith.constant dense<0.000000e+00> : vector<1x64xf32>
    %3 = vector.multi_reduction <add>, %2, %cst_2 [2] : vector<1x64x256xf32> to vector<1x64xf32>
    %cst_3 = arith.constant 3.906250e-03 : f32
    %4 = vector.broadcast %cst_3 : f32 to vector<1x64xf32>
    %5 = arith.mulf %1, %4 : vector<1x64xf32>
    %cst_4 = arith.constant 3.906250e-03 : f32
    %6 = vector.broadcast %cst_4 : f32 to vector<1x64xf32>
    %7 = arith.mulf %3, %6 : vector<1x64xf32>
    %8 = arith.mulf %5, %5 : vector<1x64xf32>
    %9 = arith.subf %7, %8 : vector<1x64xf32>
    %cst_5 = arith.constant 0.000000e+00 : f32
    %10 = vector.broadcast %cst_5 : f32 to vector<1x64xf32>
    %11 = arith.maximumf %9, %10 : vector<1x64xf32>
    %12 = math.sqrt %11 : vector<1x64xf32>
    %13 = tpu.concatenate %5, %12 in 0 : vector<1x64xf32>, vector<1x64xf32> -> vector<2x64xf32>
    %c0_6 = arith.constant 0 : index
    %c0_7 = arith.constant 0 : index
    %14 = vector.load %arg2[%c0_6, %c0_7] : memref<64x8xf32, #tpu.memory_space<vmem>>, vector<64x8xf32>
    %cst_8 = arith.constant dense<0.000000e+00> : vector<2x8xf32>
    %15 = tpu.matmul %13, %14, %cst_8 {dimension_numbers = #tpu.dot_dimension_numbers<[1], [0], [0], [1], [0, 0, 1, 1], [], []>} : vector<2x64xf32>, vector<64x8xf32>, vector<2x8xf32> -> vector<2x8xf32>
    %c0_9 = arith.constant 0 : index
    %c0_10 = arith.constant 0 : index
    %16 = vector.load %arg3[%c0_9, %c0_10] : memref<1x8xf32, #tpu.memory_space<vmem>>, vector<1x8xf32>
    %17 = vector.broadcast %16 : vector<1x8xf32> to vector<2x8xf32>
    %18 = arith.addf %15, %17 : vector<2x8xf32>
    %cst_11 = arith.constant 0.000000e+00 : f32
    %19 = vector.broadcast %cst_11 : f32 to vector<2x8xf32>
    %20 = arith.maximumf %18, %19 : vector<2x8xf32>
    %c0_12 = arith.constant 0 : index
    %c0_13 = arith.constant 0 : index
    %21 = vector.load %arg4[%c0_12, %c0_13] : memref<8x128xf32, #tpu.memory_space<vmem>>, vector<8x128xf32>
    %cst_14 = arith.constant dense<0.000000e+00> : vector<2x128xf32>
    %22 = tpu.matmul %20, %21, %cst_14 {dimension_numbers = #tpu.dot_dimension_numbers<[1], [0], [0], [1], [0, 0, 1, 1], [], []>} : vector<2x8xf32>, vector<8x128xf32>, vector<2x128xf32> -> vector<2x128xf32>
    %23 = vector.extract_strided_slice %22 {offsets = [0, 0], sizes = [1, 64], strides = [1, 1]} : vector<2x128xf32> to vector<1x64xf32>
    %c0_15 = arith.constant 0 : index
    %c0_16 = arith.constant 0 : index
    %24 = vector.load %arg5[%c0_15, %c0_16] : memref<1x128xf32, #tpu.memory_space<vmem>>, vector<1x64xf32>
    %25 = arith.addf %23, %24 : vector<1x64xf32>
    %26 = arith.negf %25 : vector<1x64xf32>
    %27 = math.exp %26 : vector<1x64xf32>
    %cst_17 = arith.constant 1.000000e+00 : f32
    %28 = vector.broadcast %cst_17 : f32 to vector<1x64xf32>
    %29 = arith.addf %28, %27 : vector<1x64xf32>
    %30 = arith.divf %28, %29 : vector<1x64xf32>
    %31 = vector.extract_strided_slice %22 {offsets = [1, 64], sizes = [1, 64], strides = [1, 1]} : vector<2x128xf32> to vector<1x64xf32>
    %c0_18 = arith.constant 0 : index
    %c64 = arith.constant 64 : index
    %32 = vector.load %arg5[%c0_18, %c64] : memref<1x128xf32, #tpu.memory_space<vmem>>, vector<1x64xf32>
    %33 = arith.addf %31, %32 : vector<1x64xf32>
    %34 = arith.negf %33 : vector<1x64xf32>
    %35 = math.exp %34 : vector<1x64xf32>
    %cst_19 = arith.constant 1.000000e+00 : f32
    %36 = vector.broadcast %cst_19 : f32 to vector<1x64xf32>
    %37 = arith.addf %36, %35 : vector<1x64xf32>
    %38 = arith.divf %36, %37 : vector<1x64xf32>
    %39 = arith.addf %30, %38 : vector<1x64xf32>
    %cst_20 = arith.constant 5.000000e-01 : f32
    %40 = vector.broadcast %cst_20 : f32 to vector<1x64xf32>
    %41 = arith.mulf %39, %40 : vector<1x64xf32>
    %c0_21 = arith.constant 0 : index
    %c0_22 = arith.constant 0 : index
    %c0_23 = arith.constant 0 : index
    %42 = vector.load %arg1[%c0_21, %c0_22, %c0_23] : memref<1x64x256xf32, #tpu.memory_space<vmem>>, vector<1x64x256xf32>
    %43 = vector.shape_cast %41 : vector<1x64xf32> to vector<1x64x1xf32>
    %44 = vector.broadcast %43 : vector<1x64x1xf32> to vector<1x64x256xf32>
    %45 = arith.mulf %42, %44 : vector<1x64x256xf32>
    %c0_24 = arith.constant 0 : index
    %c0_25 = arith.constant 0 : index
    %c0_26 = arith.constant 0 : index
    %46 = vector.load %arg6[%c0_24, %c0_25, %c0_26] : memref<1x64x256xf32, #tpu.memory_space<vmem>>, vector<1x64x256xf32>
    tpu.vector_store %arg6[%c0_24, %c0_25, %c0_26], %45 {strides = array<i32>} : memref<1x64x256xf32, #tpu.memory_space<vmem>>, vector<1x64x256xf32>,
    return
  }
  func.func @transform_0(%arg0: i32) -> (i32, i32, i32) {
    %c0_i32 = arith.constant 0 : i32
    %c0_i32_0 = arith.constant 0 : i32
    %c0_i32_1 = arith.constant 0 : i32
    return %arg0, %c0_i32, %c0_i32_0 : i32, i32, i32
  }
  func.func @transform_1(%arg0: i32) -> (i32, i32) {
    %c0_i32 = arith.constant 0 : i32
    %c0_i32_0 = arith.constant 0 : i32
    %c0_i32_1 = arith.constant 0 : i32
    return %c0_i32, %c0_i32_0 : i32, i32
  }
  func.func @transform_2(%arg0: i32) -> (i32, i32) {
    %c0_i32 = arith.constant 0 : i32
    %c0_i32_0 = arith.constant 0 : i32
    %c0_i32_1 = arith.constant 0 : i32
    return %c0_i32, %c0_i32_0 : i32, i32
  }
  func.func @transform_3(%arg0: i32) -> (i32, i32) {
    %c0_i32 = arith.constant 0 : i32
    %c0_i32_0 = arith.constant 0 : i32
    %c0_i32_1 = arith.constant 0 : i32
    return %c0_i32, %c0_i32_0 : i32, i32
  }
  func.func @transform_4(%arg0: i32) -> (i32, i32) {
    %c0_i32 = arith.constant 0 : i32
    %c0_i32_0 = arith.constant 0 : i32
    %c0_i32_1 = arith.constant 0 : i32
    return %c0_i32, %c0_i32_0 : i32, i32
  }
  func.func @transform_5(%arg0: i32) -> (i32, i32, i32) {
    %c0_i32 = arith.constant 0 : i32
    %c0_i32_0 = arith.constant 0 : i32
    %c0_i32_1 = arith.constant 0 : i32
    return %arg0, %c0_i32, %c0_i32_0 : i32, i32, i32
  }
}

</mosaic_0001>

<llo_original>
// kernel: tpu_custom_call.1
$region0: #{tpu_custom_call.1}
  #allocation0 [shape = 'u32[]', space=smem, size = 0x4, offset = 0x4, fixed_abs, tag = 'smem constant byte address 0x4 - core index']
  #allocation1 [shape = 'u32[144,128]{1,0:T(1,128)}', space=vmem, size = 0x12000, scoped, tag = 'internal scratch']
  %s0 = inlined_call_operand.hbm [shape: f32[2,64,256], index: 0, kind: input, shape index: {}]
  %s1 = inlined_call_operand.vmem [shape: f32[64,8], index: 1, kind: input, shape index: {}]
  %s2 = inlined_call_operand.vmem [shape: f32[1,8], index: 2, kind: input, shape index: {}]
  %s3 = inlined_call_operand.vmem [shape: f32[8,128], index: 3, kind: input, shape index: {}]
  %s4 = inlined_call_operand.vmem [shape: f32[1,128], index: 4, kind: input, shape index: {}]
  %s5 = inlined_call_operand.hbm [shape: f32[2,64,256], index: 5, kind: output, shape index: {}]
  %s6 = sld [smem:[#allocation0]]
  $region57: #{tpu_custom_call.1} parent=0
    _
  %s8 = ssub.s32 1, %s6
  %s9 = scalar_select 0, %s8, %s6
  $region1: #{tpu_custom_call.1} parent=0
    #allocation2 [shape = 'u8[131072]{0}', space=vmem, size = 0x20000, scoped, tag = 'input window, operand 0']
    #allocation3 [shape = 's32[2]{0}', space=sflag, size = 0x8, scoped, tag = 'scoped memory for tpu_custom_call.1']
    #allocation4 [shape = 's32[2]{0}', space=sflag, size = 0x8, scoped, tag = 'scoped memory for tpu_custom_call.1']
    #allocation5 [shape = 'u8[131072]{0}', space=vmem, size = 0x20000, scoped, tag = 'output window, operand 0']
    %10 = vsyncpa [#allocation3], 0
    %s11 = scalar_lea.sflag [#allocation3], 1
    %12 = vsyncpa %s11, 0
    %13 = vsyncpa [#allocation4], 0
    %s14 = scalar_lea.sflag [#allocation4], 1
    %15 = vsyncpa %s14, 0
    loop: start=0, step=1, limit=4
    $region2: #{tpu_custom_call.1} parent=1 // loop_pre_header
      _
    $region3: #{tpu_custom_call.1} parent=1 // loop_header
      %s17 = sphi 0, %s21
      %p18 = scmp.ge.s32.totalorder %s17, 4
      %s27 = sphi 0, %s29
      %s30 = sphi 0, %s27
      %s31 = sphi 0, %s30
      %s47 = sphi 0, %s31
      %s51 = sphi 0, %s51
      %s53 = sphi 0, %s51
      %s54 = sphi 0, %s53
      %s68 = sphi 0, %s54
      %s72 = sphi 0, %s72
      %s74 = sphi 0, %s72
      %s75 = sphi 0, %s74
      %s89 = sphi 0, %s75
      %s93 = sphi 0, %s93
      %s95 = sphi 0, %s93
      %s96 = sphi 0, %s95
      %s110 = sphi 0, %s96
      %s114 = sphi 0, %s114
      %s116 = sphi 0, %s114
      %s117 = sphi 0, %s116
      %s131 = sphi 0, %s117
      %s137 = sphi 0, %s139
      %s140 = sphi 0, %s137
      %s141 = sphi 0, %s140
      %s157 = sphi 0, %s141
    $region4: #{tpu_custom_call.1} parent=1 // loop_header_branch
      %20 = sbr.rel (%p18) target = $region8
    $region5: #{tpu_custom_call.1} parent=1 // loop_body
      %s22 = ssub.s32 %s17, 1
      %s23 = ssub.s32 %s17, 2
      %s24 = sadd.s32 %s17, 1
      %s25 = ssub.s32 %s17, %s24
      %p26 = scmp.eq.s32.totalorder %s25, 0
      %s28 = sadd.s32 %s27, 1
      %s29 = scalar_select %p26, %s27, %s28
      %p32 = pneg %p26
      %p33 = scmp.eq.s32.totalorder %s17, 1
      %p34 = por %p32, %p33
      %p35 = scmp.ne.s32.totalorder %s27, %s30
      %p36 = scmp.eq.s32.totalorder %s17, 0
      %p37 = por %p35, %p36
      %p38 = scmp.ne.s32.totalorder %s27, %s30
      %p39 = scmp.eq.s32.totalorder %s22, 1
      %p40 = por %p38, %p39
      %p41 = scmp.ne.s32.totalorder %s30, %s31
      %p42 = scmp.eq.s32.totalorder %s22, 0
      %p43 = por %p41, %p42
      %p44 = scmp.ne.s32.totalorder %s30, %s31
      %p45 = scmp.eq.s32.totalorder %s23, 1
      %p46 = por %p44, %p45
      %p48 = scmp.ne.s32.totalorder %s31, %s47
      %p49 = scmp.eq.s32.totalorder %s23, 0
      %p50 = por %p48, %p49
      %s52 = sadd.s32 %s51, 1
      %p55 = scmp.eq.s32.totalorder %s17, 1
      %p56 = scmp.ne.s32.totalorder %s51, %s53
      %p57 = scmp.eq.s32.totalorder %s17, 0
      %p58 = por %p56, %p57
      %p59 = scmp.ne.s32.totalorder %s51, %s53
      %p60 = scmp.eq.s32.totalorder %s22, 1
      %p61 = por %p59, %p60
      %p62 = scmp.ne.s32.totalorder %s53, %s54
      %p63 = scmp.eq.s32.totalorder %s22, 0
      %p64 = por %p62, %p63
      %p65 = scmp.ne.s32.totalorder %s53, %s54
      %p66 = scmp.eq.s32.totalorder %s23, 1
      %p67 = por %p65, %p66
      %p69 = scmp.ne.s32.totalorder %s54, %s68
      %p70 = scmp.eq.s32.totalorder %s23, 0
      %p71 = por %p69, %p70
      %s73 = sadd.s32 %s72, 1
      %p76 = scmp.eq.s32.totalorder %s17, 1
      %p77 = scmp.ne.s32.totalorder %s72, %s74
      %p78 = scmp.eq.s32.totalorder %s17, 0
      %p79 = por %p77, %p78
      %p80 = scmp.ne.s32.totalorder %s72, %s74
      %p81 = scmp.eq.s32.totalorder %s22, 1
      %p82 = por %p80, %p81
      %p83 = scmp.ne.s32.totalorder %s74, %s75
      %p84 = scmp.eq.s32.totalorder %s22, 0
      %p85 = por %p83, %p84
      %p86 = scmp.ne.s32.totalorder %s74, %s75
      %p87 = scmp.eq.s32.totalorder %s23, 1
      %p88 = por %p86, %p87
      %p90 = scmp.ne.s32.totalorder %s75, %s89
      %p91 = scmp.eq.s32.totalorder %s23, 0
      %p92 = por %p90, %p91
      %s94 = sadd.s32 %s93, 1
      %p97 = scmp.eq.s32.totalorder %s17, 1
      %p98 = scmp.ne.s32.totalorder %s93, %s95
      %p99 = scmp.eq.s32.totalorder %s17, 0
      %p100 = por %p98, %p99
      %p101 = scmp.ne.s32.totalorder %s93, %s95
      %p102 = scmp.eq.s32.totalorder %s22, 1
      %p103 = por %p101, %p102
      %p104 = scmp.ne.s32.totalorder %s95, %s96
      %p105 = scmp.eq.s32.totalorder %s22, 0
      %p106 = por %p104, %p105
      %p107 = scmp.ne.s32.totalorder %s95, %s96
      %p108 = scmp.eq.s32.totalorder %s23, 1
      %p109 = por %p107, %p108
      %p111 = scmp.ne.s32.totalorder %s96, %s110
      %p112 = scmp.eq.s32.totalorder %s23, 0
      %p113 = por %p111, %p112
      %s115 = sadd.s32 %s114, 1
      %p118 = scmp.eq.s32.totalorder %s17, 1
      %p119 = scmp.ne.s32.totalorder %s114, %s116
      %p120 = scmp.eq.s32.totalorder %s17, 0
      %p121 = por %p119, %p120
      %p122 = scmp.ne.s32.totalorder %s114, %s116
      %p123 = scmp.eq.s32.totalorder %s22, 1
      %p124 = por %p122, %p123
      %p125 = scmp.ne.s32.totalorder %s116, %s117
      %p126 = scmp.eq.s32.totalorder %s22, 0
      %p127 = por %p125, %p126
      %p128 = scmp.ne.s32.totalorder %s116, %s117
      %p129 = scmp.eq.s32.totalorder %s23, 1
      %p130 = por %p128, %p129
      %p132 = scmp.ne.s32.totalorder %s117, %s131
      %p133 = scmp.eq.s32.totalorder %s23, 0
      %p134 = por %p132, %p133
      %s135 = ssub.s32 %s17, %s24
      %p136 = scmp.eq.s32.totalorder %s135, 0
      %s138 = sadd.s32 %s137, 1
      %s139 = scalar_select %p136, %s137, %s138
      %p142 = pneg %p136
      %p143 = scmp.eq.s32.totalorder %s17, 1
      %p144 = por %p142, %p143
      %p145 = scmp.ne.s32.totalorder %s137, %s140
      %p146 = scmp.eq.s32.totalorder %s17, 0
      %p147 = por %p145, %p146
      %p148 = scmp.ne.s32.totalorder %s137, %s140
      %p149 = scmp.eq.s32.totalorder %s22, 1
      %p150 = por %p148, %p149
      %p151 = scmp.ne.s32.totalorder %s140, %s141
      %p152 = scmp.eq.s32.totalorder %s22, 0
      %p153 = por %p151, %p152
      %p154 = scmp.ne.s32.totalorder %s140, %s141
      %p155 = scmp.eq.s32.totalorder %s23, 1
      %p156 = por %p154, %p155
      %p158 = scmp.ne.s32.totalorder %s141, %s157
      %p159 = scmp.eq.s32.totalorder %s23, 0
      %p160 = por %p158, %p159
      %p161 = scmp.le.s32.totalorder 1, %s17
      %p162 = scmp.lt.s32.totalorder %s17, 3
      %p163 = pnand %p161, %p162
      %p164 = pneg %p163
      // Predicated region
      $region9: #{tpu_custom_call.1} parent=5 // pred_check
        _
      $region10: #{tpu_custom_call.1} parent=5 // pred_check_branch
        %166 = sbr.rel (%p163) target = $region12
      $region11: #{tpu_custom_call.1} parent=5 // pred_region
        %s167 = ssub.s32 %s17, 1
        // Predicated region
        $region13: #{tpu_custom_call.1} parent=11 // pred_check
          %p168 = pneg %p64
        $region14: #{tpu_custom_call.1} parent=11 // pred_check_branch
          %170 = sbr.rel (%p168) target = $region16
        $region15: #{tpu_custom_call.1} parent=11 // pred_region
          _
        $region16: #{tpu_custom_call.1} parent=11 // pred_fallthru
          _
        // Predicated region
        $region17: #{tpu_custom_call.1} parent=11 // pred_check
          %p171 = pneg %p85
        $region18: #{tpu_custom_call.1} parent=11 // pred_check_branch
          %173 = sbr.rel (%p171) target = $region20
        $region19: #{tpu_custom_call.1} parent=11 // pred_region
          _
        $region20: #{tpu_custom_call.1} parent=11 // pred_fallthru
          _
        // Predicated region
        $region21: #{tpu_custom_call.1} parent=11 // pred_check
          %p174 = pneg %p106
        $region22: #{tpu_custom_call.1} parent=11 // pred_check_branch
          %176 = sbr.rel (%p174) target = $region24
        $region23: #{tpu_custom_call.1} parent=11 // pred_region
          _
        $region24: #{tpu_custom_call.1} parent=11 // pred_fallthru
          _
        // Predicated region
        $region25: #{tpu_custom_call.1} parent=11 // pred_check
          %p177 = pneg %p127
        $region26: #{tpu_custom_call.1} parent=11 // pred_check_branch
          %179 = sbr.rel (%p177) target = $region28
        $region27: #{tpu_custom_call.1} parent=11 // pred_region
          _
        $region28: #{tpu_custom_call.1} parent=11 // pred_fallthru
          _
      $region12: #{tpu_custom_call.1} parent=5 // pred_fallthru
        _
      %p180 = scmp.lt.s32.totalorder %s17, 2
      // Predicated region
      $region29: #{tpu_custom_call.1} parent=5 // pred_check
        %p181 = pneg %p180
      $region30: #{tpu_custom_call.1} parent=5 // pred_check_branch
        %183 = sbr.rel (%p181) target = $region32
      $region31: #{tpu_custom_call.1} parent=5 // pred_region
        // Predicated region
        $region33: #{tpu_custom_call.1} parent=31 // pred_check
          %p184 = pneg %p37
        $region34: #{tpu_custom_call.1} parent=31 // pred_check_branch
          %186 = sbr.rel (%p184) target = $region36
        $region35: #{tpu_custom_call.1} parent=31 // pred_region
          %s187 = sand.u32 %s27, 1
          %s188 = scalar_lea.sflag [#allocation3], %s187
          %s189 = sand.u32 %s27, 1
          %s190 = smul.addr %s189, 128
          %s191 = scalar_lea.vmem [#allocation2], %s190
          %s193 = ssub.s32 2048, 2048
          %194 = vsyncadd %s188, %s193
          %s195 = smul.addr %s17, 16
          %s196 = smul.addr %s195, 128
          %s197 = scalar_lea.hbm %s0, %s196
          %s198 = sshll.u32 %s191, 4
          %s199 = int_to_ptr.vmem [resolvable:$true] %s198
          %204 = dma.hbm_to_vmem [thread:$0]  %s197, 2048, %s199, %s188, 256, 256, 16
        $region36: #{tpu_custom_call.1} parent=31 // pred_fallthru
          _
      $region32: #{tpu_custom_call.1} parent=5 // pred_fallthru
        _
      %p205 = scmp.le.s32.totalorder 1, %s17
      %p206 = scmp.lt.s32.totalorder %s17, 3
      %p207 = pnand %p205, %p206
      %p208 = pneg %p207
      // Predicated region
      $region37: #{tpu_custom_call.1} parent=5 // pred_check
        _
      $region38: #{tpu_custom_call.1} parent=5 // pred_check_branch
        %210 = sbr.rel (%p207) target = $region40
      $region39: #{tpu_custom_call.1} parent=5 // pred_region
        %s211 = ssub.s32 %s17, 1
        %s212 = sand.u32 %s30, 1
        %s213 = scalar_lea.sflag [#allocation3], %s212
        %s214 = sand.u32 %s30, 1
        %s215 = smul.addr %s214, 128
        %s216 = scalar_lea.vmem [#allocation2], %s215
        // Predicated region
        $region41: #{tpu_custom_call.1} parent=39 // pred_check
          %p217 = pneg %p43
        $region42: #{tpu_custom_call.1} parent=39 // pred_check_branch
          %219 = sbr.rel (%p217) target = $region44
        $region43: #{tpu_custom_call.1} parent=39 // pred_region
          %220 = dma.done %s213, 2048
        $region44: #{tpu_custom_call.1} parent=39 // pred_fallthru
          _
        %s221 = sand.u32 %s30, 1
        %s222 = scalar_lea.sflag [#allocation3], %s221
        %s223 = sand.u32 %s30, 1
        %s224 = smul.addr %s223, 128
        %s225 = scalar_lea.vmem [#allocation2], %s224
        %p226 = pneg %p43
        %p227 = pneg %p40
        %p228 = pneg %p64
        %p229 = pneg %p61
        %p230 = pneg %p85
        %p231 = pneg %p82
        %p232 = pneg %p106
        %p233 = pneg %p103
        %p234 = pneg %p127
        %p235 = pneg %p124
        %p236 = pneg %p153
        %p237 = pneg %p150
        %s238 = sand.u32 %s140, 1
        %s239 = scalar_lea.sflag [#allocation4], %s238
        %s240 = sand.u32 %s140, 1
        %s241 = smul.addr %s240, 128
        %s242 = scalar_lea.vmem [#allocation5], %s241
        %v243 = vld [vmem:[%s216] sm:$0xff]
        %v244 = vld [vmem:[%s216 + $0x8] sm:$0xff]
        %v245 = vld [vmem:[%s216 + $0x10] sm:$0xff]
        %v246 = vld [vmem:[%s216 + $0x18] sm:$0xff]
        %v247 = vld [vmem:[%s216 + $0x20] sm:$0xff]
        %v248 = vld [vmem:[%s216 + $0x28] sm:$0xff]
        %v249 = vld [vmem:[%s216 + $0x30] sm:$0xff]
        %v250 = vld [vmem:[%s216 + $0x38] sm:$0xff]
        %v251 = vld [vmem:[%s216 + $0x40] sm:$0xff]
        %v252 = vld [vmem:[%s216 + $0x48] sm:$0xff]
        %v253 = vld [vmem:[%s216 + $0x50] sm:$0xff]
        %v254 = vld [vmem:[%s216 + $0x58] sm:$0xff]
        %v255 = vld [vmem:[%s216 + $0x60] sm:$0xff]
        %v256 = vld [vmem:[%s216 + $0x68] sm:$0xff]
        %v257 = vld [vmem:[%s216 + $0x70] sm:$0xff]
        %v258 = vld [vmem:[%s216 + $0x78] sm:$0xff]
        %v259 = vadd.f32 %v243, %v244
        %260 = vadd.xlane.f32.xlu0 %v259
        %v261 = vpop.xlane.xlu0 %260
        %v262 = vadd.f32 %v245, %v246
        %263 = vadd.xlane.f32.xlu0 %v262
        %v264 = vpop.xlane.xlu0 %263
        %v265 = vadd.f32 %v247, %v248
        %266 = vadd.xlane.f32.xlu0 %v265
        %v267 = vpop.xlane.xlu0 %266
        %v268 = vadd.f32 %v249, %v250
        %269 = vadd.xlane.f32.xlu0 %v268
        %v270 = vpop.xlane.xlu0 %269
        %v271 = vadd.f32 %v251, %v252
        %272 = vadd.xlane.f32.xlu0 %v271
        %v273 = vpop.xlane.xlu0 %272
        %v274 = vadd.f32 %v253, %v254
        %275 = vadd.xlane.f32.xlu0 %v274
        %v276 = vpop.xlane.xlu0 %275
        %v277 = vadd.f32 %v255, %v256
        %278 = vadd.xlane.f32.xlu0 %v277
        %v279 = vpop.xlane.xlu0 %278
        %v280 = vadd.f32 %v257, %v258
        %281 = vadd.xlane.f32.xlu0 %v280
        %v282 = vpop.xlane.xlu0 %281
        %v283 = vmul.f32 %v243, %v243
        %v284 = vmul.f32 %v244, %v244
        %v285 = vmul.f32 %v245, %v245
        %v286 = vmul.f32 %v246, %v246
        %v287 = vmul.f32 %v247, %v247
        %v288 = vmul.f32 %v248, %v248
        %v289 = vmul.f32 %v249, %v249
        %v290 = vmul.f32 %v250, %v250
        %v291 = vmul.f32 %v251, %v251
        %v292 = vmul.f32 %v252, %v252
        %v293 = vmul.f32 %v253, %v253
        %v294 = vmul.f32 %v254, %v254
        %v295 = vmul.f32 %v255, %v255
        %v296 = vmul.f32 %v256, %v256
        %v297 = vmul.f32 %v257, %v257
        %v298 = vmul.f32 %v258, %v258
        %v299 = vadd.f32 %v283, %v284
        %300 = vadd.xlane.f32.xlu0 %v299
        %v301 = vpop.xlane.xlu0 %300
        %v302 = vadd.f32 %v285, %v286
        %303 = vadd.xlane.f32.xlu0 %v302
        %v304 = vpop.xlane.xlu0 %303
        %v305 = vadd.f32 %v287, %v288
        %306 = vadd.xlane.f32.xlu0 %v305
        %v307 = vpop.xlane.xlu0 %306
        %v308 = vadd.f32 %v289, %v290
        %309 = vadd.xlane.f32.xlu0 %v308
        %v310 = vpop.xlane.xlu0 %309
        %v311 = vadd.f32 %v291, %v292
        %312 = vadd.xlane.f32.xlu0 %v311
        %v313 = vpop.xlane.xlu0 %312
        %v314 = vadd.f32 %v293, %v294
        %315 = vadd.xlane.f32.xlu0 %v314
        %v316 = vpop.xlane.xlu0 %315
        %v317 = vadd.f32 %v295, %v296
        %318 = vadd.xlane.f32.xlu0 %v317
        %v319 = vpop.xlane.xlu0 %318
        %v320 = vadd.f32 %v297, %v298
        %321 = vadd.xlane.f32.xlu0 %v320
        %v322 = vpop.xlane.xlu0 %321
        %v323 = vmul.f32 %v261, 0.00390625
        %v324 = vmul.f32 %v264, 0.00390625
        %v325 = vmul.f32 %v267, 0.00390625
        %v326 = vmul.f32 %v270, 0.00390625
        %v327 = vmul.f32 %v273, 0.00390625
        %v328 = vmul.f32 %v276, 0.00390625
        %v329 = vmul.f32 %v279, 0.00390625
        %v330 = vmul.f32 %v282, 0.00390625
        %v331 = vmul.f32 %v301, 0.00390625
        %v332 = vmul.f32 %v304, 0.00390625
        %v333 = vmul.f32 %v307, 0.00390625
        %v334 = vmul.f32 %v310, 0.00390625
        %v335 = vmul.f32 %v313, 0.00390625
        %v336 = vmul.f32 %v316, 0.00390625
        %v337 = vmul.f32 %v319, 0.00390625
        %v338 = vmul.f32 %v322, 0.00390625
        %v339 = vmul.f32 %v323, %v323
        %v340 = vmul.f32 %v324, %v324
        %v341 = vmul.f32 %v325, %v325
        %v342 = vmul.f32 %v326, %v326
        %v343 = vmul.f32 %v327, %v327
        %v344 = vmul.f32 %v328, %v328
        %v345 = vmul.f32 %v329, %v329
        %v346 = vmul.f32 %v330, %v330
        %v347 = vsub.f32 %v331, %v339
        %v348 = vsub.f32 %v332, %v340
        %v349 = vsub.f32 %v333, %v341
        %v350 = vsub.f32 %v334, %v342
        %v351 = vsub.f32 %v335, %v343
        %v352 = vsub.f32 %v336, %v344
        %v353 = vsub.f32 %v337, %v345
        %v354 = vsub.f32 %v338, %v346
        %v355 = vmax.f32 %v347, 0.0
        %v356 = vmax.f32 %v348, 0.0
        %v357 = vmax.f32 %v349, 0.0
        %v358 = vmax.f32 %v350, 0.0
        %v359 = vmax.f32 %v351, 0.0
        %v360 = vmax.f32 %v352, 0.0
        %v361 = vmax.f32 %v353, 0.0
        %v362 = vmax.f32 %v354, 0.0
        %v363 = vrsqrt.pop %v355
        %v364 = vmul.f32 %v355, %v363
        %vm365 = vcmp.eq.f32.partialorder %v355, inf
        %v366 = vsel %vm365, %v355, %v364
        %vm367 = vcmp.eq.f32.partialorder %v355, 0.0
        %v368 = vand.u32 %v355, 2147483648
        %v369 = vsel %vm367, %v368, %v366
        %v370 = vrsqrt.pop %v356
        %v371 = vmul.f32 %v356, %v370
        %vm372 = vcmp.eq.f32.partialorder %v356, inf
        %v373 = vsel %vm372, %v356, %v371
        %vm374 = vcmp.eq.f32.partialorder %v356, 0.0
        %v375 = vand.u32 %v356, 2147483648
        %v376 = vsel %vm374, %v375, %v373
        %v377 = vrsqrt.pop %v357
        %v378 = vmul.f32 %v357, %v377
        %vm379 = vcmp.eq.f32.partialorder %v357, inf
        %v380 = vsel %vm379, %v357, %v378
        %vm381 = vcmp.eq.f32.partialorder %v357, 0.0
        %v382 = vand.u32 %v357, 2147483648
        %v383 = vsel %vm381, %v382, %v380
        %v384 = vrsqrt.pop %v358
        %v385 = vmul.f32 %v358, %v384
        %vm386 = vcmp.eq.f32.partialorder %v358, inf
        %v387 = vsel %vm386, %v358, %v385
        %vm388 = vcmp.eq.f32.partialorder %v358, 0.0
        %v389 = vand.u32 %v358, 2147483648
        %v390 = vsel %vm388, %v389, %v387
        %v391 = vrsqrt.pop %v359
        %v392 = vmul.f32 %v359, %v391
        %vm393 = vcmp.eq.f32.partialorder %v359, inf
        %v394 = vsel %vm393, %v359, %v392
        %vm395 = vcmp.eq.f32.partialorder %v359, 0.0
        %v396 = vand.u32 %v359, 2147483648
        %v397 = vsel %vm395, %v396, %v394
        %v398 = vrsqrt.pop %v360
        %v399 = vmul.f32 %v360, %v398
        %vm400 = vcmp.eq.f32.partialorder %v360, inf
        %v401 = vsel %vm400, %v360, %v399
        %vm402 = vcmp.eq.f32.partialorder %v360, 0.0
        %v403 = vand.u32 %v360, 2147483648
        %v404 = vsel %vm402, %v403, %v401
        %v405 = vrsqrt.pop %v361
        %v406 = vmul.f32 %v361, %v405
        %vm407 = vcmp.eq.f32.partialorder %v361, inf
        %v408 = vsel %vm407, %v361, %v406
        %vm409 = vcmp.eq.f32.partialorder %v361, 0.0
        %v410 = vand.u32 %v361, 2147483648
        %v411 = vsel %vm409, %v410, %v408
        %v412 = vrsqrt.pop %v362
        %v413 = vmul.f32 %v362, %v412
        %vm414 = vcmp.eq.f32.partialorder %v362, inf
        %v415 = vsel %vm414, %v362, %v413
        %vm416 = vcmp.eq.f32.partialorder %v362, 0.0
        %v417 = vand.u32 %v362, 2147483648
        %v418 = vsel %vm416, %v417, %v415
        %v427 = vlaneseq
        %v428 = vand.u32 %v427, 127
        %v429 = vlaneseq
        %v430 = vshrl.u32 %v429, 7
        %v431 = vsub.s32 %v428, %v430
        %v432 = vrot.slane %v323, %v431
        %v433 = vadd.s32 %v428, 4294967288
        %v434 = vlaneseq
        %v435 = vshrl.u32 %v434, 7
        %v436 = vsub.s32 %v433, %v435
        %v437 = vrot.slane %v324, %v436
        %vm438 = vcmask 130112
        %v439 = vsel %vm438, %v437, %v432
        %v440 = vadd.s32 %v428, 4294967280
        %v441 = vlaneseq
        %v442 = vshrl.u32 %v441, 7
        %v443 = vsub.s32 %v440, %v442
        %v444 = vrot.slane %v325, %v443
        %vm445 = vcmask 195712
        %v446 = vsel %vm445, %v444, %v439
        %v447 = vadd.s32 %v428, 4294967272
        %v448 = vlaneseq
        %v449 = vshrl.u32 %v448, 7
        %v450 = vsub.s32 %v447, %v449
        %v451 = vrot.slane %v326, %v450
        %vm452 = vcmask 261312
        %v453 = vsel %vm452, %v451, %v446
        %v454 = vadd.s32 %v428, 4294967264
        %v455 = vlaneseq
        %v456 = vshrl.u32 %v455, 7
        %v457 = vsub.s32 %v454, %v456
        %v458 = vrot.slane %v327, %v457
        %vm459 = vcmask 326912
        %v460 = vsel %vm459, %v458, %v453
        %v461 = vadd.s32 %v428, 4294967256
        %v462 = vlaneseq
        %v463 = vshrl.u32 %v462, 7
        %v464 = vsub.s32 %v461, %v463
        %v465 = vrot.slane %v328, %v464
        %vm466 = vcmask 392512
        %v467 = vsel %vm466, %v465, %v460
        %v468 = vadd.s32 %v428, 4294967248
        %v469 = vlaneseq
        %v470 = vshrl.u32 %v469, 7
        %v471 = vsub.s32 %v468, %v470
        %v472 = vrot.slane %v329, %v471
        %vm473 = vcmask 458112
        %v474 = vsel %vm473, %v472, %v467
        %v475 = vadd.s32 %v428, 4294967240
        %v476 = vlaneseq
        %v477 = vshrl.u32 %v476, 7
        %v478 = vsub.s32 %v475, %v477
        %v479 = vrot.slane %v330, %v478
        %vm480 = vcmask 523712
        %v481 = vsel %vm480, %v479, %v474
        %v491 = vlaneseq
        %v492 = vshrl.u32 %v491, 7
        %v493 = vsub.s32 %v428, %v492
        %v494 = vrot.slane %v369, %v493
        %v495 = vlaneseq
        %v496 = vshrl.u32 %v495, 7
        %v497 = vsub.s32 %v433, %v496
        %v498 = vrot.slane %v376, %v497
        %v499 = vsel %vm438, %v498, %v494
        %v500 = vlaneseq
        %v501 = vshrl.u32 %v500, 7
        %v502 = vsub.s32 %v440, %v501
        %v503 = vrot.slane %v383, %v502
        %v504 = vsel %vm445, %v503, %v499
        %v505 = vlaneseq
        %v506 = vshrl.u32 %v505, 7
        %v507 = vsub.s32 %v447, %v506
        %v508 = vrot.slane %v390, %v507
        %v509 = vsel %vm452, %v508, %v504
        %v510 = vlaneseq
        %v511 = vshrl.u32 %v510, 7
        %v512 = vsub.s32 %v454, %v511
        %v513 = vrot.slane %v397, %v512
        %v514 = vsel %vm459, %v513, %v509
        %v515 = vlaneseq
        %v516 = vshrl.u32 %v515, 7
        %v517 = vsub.s32 %v461, %v516
        %v518 = vrot.slane %v404, %v517
        %v519 = vsel %vm466, %v518, %v514
        %v520 = vlaneseq
        %v521 = vshrl.u32 %v520, 7
        %v522 = vsub.s32 %v468, %v521
        %v523 = vrot.slane %v411, %v522
        %v524 = vsel %vm473, %v523, %v519
        %v525 = vlaneseq
        %v526 = vshrl.u32 %v525, 7
        %v527 = vsub.s32 %v475, %v526
        %v528 = vrot.slane %v418, %v527
        %v529 = vsel %vm480, %v528, %v524
        %vm531 = vcmask 1040384
        %v532 = vsel %vm531, %v481, %v529
        %v533 = vld [vmem:[%s1] sm:$0xff]
        %v534 = vld [vmem:[%s1 + $0x8] sm:$0xff]
        %v535 = vld [vmem:[%s1 + $0x10] sm:$0xff]
        %v536 = vld [vmem:[%s1 + $0x18] sm:$0xff]
        %v537 = vld [vmem:[%s1 + $0x20] sm:$0xff]
        %v538 = vld [vmem:[%s1 + $0x28] sm:$0xff]
        %v539 = vld [vmem:[%s1 + $0x30] sm:$0xff]
        %v540 = vld [vmem:[%s1 + $0x38] sm:$0xff]
        %v541 = vld [vmem:[%s2] sm:$0x1]
        %v543 = vlaneseq
        %v544 = vshrl.u32 %v543, 7
        %v545 = vsub.s32 0, %v544
        %v546 = vrot.slane %v541, %v545
        %vm548 = vcmask 523264
        %v550 = vsel %vm548, %v532, 0
        %552 = vmatprep.subr.mxu0 0.0
        %553 = vmatpush1.msra.mxu0 0.0
        %554 = vmatprep.subr.mxu0 0.0
        %555 = vmatpush1.msra.mxu0 0.0
        %556 = vmatprep.subr.mxu0 0.0
        %557 = vmatpush1.msra.mxu0 0.0
        %558 = vmatprep.subr.mxu0 0.0
        %559 = vmatpush1.msra.mxu0 0.0
        %560 = vmatprep.subr.mxu0 0.0
        %561 = vmatpush1.msra.mxu0 0.0
        %562 = vmatprep.subr.mxu0 0.0
        %563 = vmatpush1.msra.mxu0 0.0
        %564 = vmatprep.subr.mxu0 0.0
        %565 = vmatpush1.msra.mxu0 0.0
        %566 = vmatprep.subr.mxu0 0.0
        %567 = vmatpush1.msra.mxu0 0.0
        %568 = vmatprep.subr.mxu0 0.0
        %569 = vmatpush1.msra.mxu0 %v540
        %570 = vmatprep.subr.mxu0 0.0
        %571 = vmatpush1.msra.mxu0 %v539
        %572 = vmatprep.subr.mxu0 0.0
        %573 = vmatpush1.msra.mxu0 %v538
        %574 = vmatprep.subr.mxu0 0.0
        %575 = vmatpush1.msra.mxu0 %v537
        %576 = vmatprep.subr.mxu0 0.0
        %577 = vmatpush1.msra.mxu0 %v536
        %578 = vmatprep.subr.mxu0 0.0
        %579 = vmatpush1.msra.mxu0 %v535
        %580 = vmatprep.subr.mxu0 0.0
        %581 = vmatpush1.msra.mxu0 %v534
        %582 = vmatprep.subr.mxu0 0.0
        %583 = vmatpush1.msra.mxu0 %v533
        %584 = vmatprep.subr.mxu0 0.0
        %585 = vmatpush2.msra.mxu0 0.0
        %586 = vmatprep.subr.mxu0 0.0
        %587 = vmatpush2.msra.mxu0 0.0
        %588 = vmatprep.subr.mxu0 0.0
        %589 = vmatpush2.msra.mxu0 0.0
        %590 = vmatprep.subr.mxu0 0.0
        %591 = vmatpush2.msra.mxu0 0.0
        %592 = vmatprep.subr.mxu0 0.0
        %593 = vmatpush2.msra.mxu0 0.0
        %594 = vmatprep.subr.mxu0 0.0
        %595 = vmatpush2.msra.mxu0 0.0
        %596 = vmatprep.subr.mxu0 0.0
        %597 = vmatpush2.msra.mxu0 0.0
        %598 = vmatprep.subr.mxu0 0.0
        %599 = vmatpush2.msra.mxu0 0.0
        %600 = vmatprep.subr.mxu0 0.0
        %601 = vmatpush2.msra.mxu0 0.0
        %602 = vmatprep.subr.mxu0 0.0
        %603 = vmatpush2.msra.mxu0 0.0
        %604 = vmatprep.subr.mxu0 0.0
        %605 = vmatpush2.msra.mxu0 0.0
        %606 = vmatprep.subr.mxu0 0.0
        %607 = vmatpush2.msra.mxu0 0.0
        %608 = vmatprep.subr.mxu0 0.0
        %609 = vmatpush2.msra.mxu0 0.0
        %610 = vmatprep.subr.mxu0 0.0
        %611 = vmatpush2.msra.mxu0 0.0
        %612 = vmatprep.subr.mxu0 0.0
        %613 = vmatpush2.msra.mxu0 0.0
        %614 = vmatprep.subr.mxu0 0.0
        %615 = vmatpush2.msra.mxu0 0.0
        %616 = vmatprep.mubr.f32.mxu0 0.0
        %617 = vmatmul.mubr.f32.gmra.mxu0 %v550
        %v618 = vpop.f32.mrf.mxu0
        %v619 = vadd.f32 %v546, %v618
        %v620 = vpop.f32.mrf.mxu0
        %621 = vdwg.mxu0
        %v622 = vmax.f32 %v619, 0.0
        %v623 = vld [vmem:[%s3] sm:$0xff]
        %vm624 = vcmask 64512
        %v626 = vsel %vm624, %v622, 0
        %628 = vmatprep.subr.mxu0 0.0
        %629 = vmatpush1.msra.mxu0 0.0
        %630 = vmatprep.subr.mxu0 0.0
        %631 = vmatpush1.msra.mxu0 0.0
        %632 = vmatprep.subr.mxu0 0.0
        %633 = vmatpush1.msra.mxu0 0.0
        %634 = vmatprep.subr.mxu0 0.0
        %635 = vmatpush1.msra.mxu0 0.0
        %636 = vmatprep.subr.mxu0 0.0
        %637 = vmatpush1.msra.mxu0 0.0
        %638 = vmatprep.subr.mxu0 0.0
        %639 = vmatpush1.msra.mxu0 0.0
        %640 = vmatprep.subr.mxu0 0.0
        %641 = vmatpush1.msra.mxu0 0.0
        %642 = vmatprep.subr.mxu0 0.0
        %643 = vmatpush1.msra.mxu0 0.0
        %644 = vmatprep.subr.mxu0 0.0
        %645 = vmatpush1.msra.mxu0 0.0
        %646 = vmatprep.subr.mxu0 0.0
        %647 = vmatpush1.msra.mxu0 0.0
        %648 = vmatprep.subr.mxu0 0.0
        %649 = vmatpush1.msra.mxu0 0.0
        %650 = vmatprep.subr.mxu0 0.0
        %651 = vmatpush1.msra.mxu0 0.0
        %652 = vmatprep.subr.mxu0 0.0
        %653 = vmatpush1.msra.mxu0 0.0
        %654 = vmatprep.subr.mxu0 0.0
        %655 = vmatpush1.msra.mxu0 0.0
        %656 = vmatprep.subr.mxu0 0.0
        %657 = vmatpush1.msra.mxu0 0.0
        %658 = vmatprep.subr.mxu0 0.0
        %659 = vmatpush1.msra.mxu0 %v623
        %660 = vmatprep.subr.mxu0 0.0
        %661 = vmatpush2.msra.mxu0 0.0
        %662 = vmatprep.subr.mxu0 0.0
        %663 = vmatpush2.msra.mxu0 0.0
        %664 = vmatprep.subr.mxu0 0.0
        %665 = vmatpush2.msra.mxu0 0.0
        %666 = vmatprep.subr.mxu0 0.0
        %667 = vmatpush2.msra.mxu0 0.0
        %668 = vmatprep.subr.mxu0 0.0
        %669 = vmatpush2.msra.mxu0 0.0
        %670 = vmatprep.subr.mxu0 0.0
        %671 = vmatpush2.msra.mxu0 0.0
        %672 = vmatprep.subr.mxu0 0.0
        %673 = vmatpush2.msra.mxu0 0.0
        %674 = vmatprep.subr.mxu0 0.0
        %675 = vmatpush2.msra.mxu0 0.0
        %676 = vmatprep.subr.mxu0 0.0
        %677 = vmatpush2.msra.mxu0 0.0
        %678 = vmatprep.subr.mxu0 0.0
        %679 = vmatpush2.msra.mxu0 0.0
        %680 = vmatprep.subr.mxu0 0.0
        %681 = vmatpush2.msra.mxu0 0.0
        %682 = vmatprep.subr.mxu0 0.0
        %683 = vmatpush2.msra.mxu0 0.0
        %684 = vmatprep.subr.mxu0 0.0
        %685 = vmatpush2.msra.mxu0 0.0
        %686 = vmatprep.subr.mxu0 0.0
        %687 = vmatpush2.msra.mxu0 0.0
        %688 = vmatprep.subr.mxu0 0.0
        %689 = vmatpush2.msra.mxu0 0.0
        %690 = vmatprep.subr.mxu0 0.0
        %691 = vmatpush2.msra.mxu0 0.0
        %692 = vmatprep.mubr.f32.mxu0 0.0
        %693 = vmatmul.mubr.f32.gmra.mxu0 %v626
        %v694 = vpop.f32.mrf.mxu0
        %v695 = vadd.f32 0.0, %v694
        %v696 = vpop.f32.mrf.mxu0
        %697 = vdwg.mxu0
        %v698 = vld [vmem:[%s4] sm:$0x1]
        %v699 = vadd.f32 %v695, %v698
        %v700 = vxor.u32 %v699, 2147483648
        %v701 = vmul.f32 %v700, 1.442695
        %v702 = vpow.pop %v701
        %v703 = vadd.f32 %v702, 1.0
        %v704 = vrcp.pop %v703
        %v705 = vmul.f32 1.0, %v704
        %v707 = vlaneseq
        %v708 = vshrl.u32 %v707, 7
        %v709 = vsub.s32 0, %v708
        %v710 = vrot.slane %v698, %v709
        %v712 = vadd.f32 %v695, %v710
        %v713 = vxor.u32 %v712, 2147483648
        %v714 = vmul.f32 %v713, 1.442695
        %v715 = vpow.pop %v714
        %v716 = vadd.f32 %v715, 1.0
        %v717 = vrcp.pop %v716
        %v718 = vmul.f32 1.0, %v717
        %v720 = vrot.slane %v718, 1
        %721 = vrot.lane.b32.xlu0 %v720, 64
        %v722 = vpop.permute.xlu0 %721
        %v724 = vadd.f32 %v705, %v722
        %v725 = vmul.f32 %v724, 0.5
        %v726 = vlaneseq
        %v727 = vshrl.u32 %v726, 7
        %v728 = vsub.s32 0, %v727
        %v729 = vrot.slane %v725, %v728
        %731 = vbcast.lane.b32.xlu0 %v729, 256
        %v732 = vpop.permute.xlu0 %731
        %s734 = sor.u32 256, 8
        %735 = vbcast.lane.b32.xlu0 %v729, %s734
        %v736 = vpop.permute.xlu0 %735
        %s738 = sor.u32 256, 16
        %739 = vbcast.lane.b32.xlu0 %v729, %s738
        %v740 = vpop.permute.xlu0 %739
        %s742 = sor.u32 256, 24
        %743 = vbcast.lane.b32.xlu0 %v729, %s742
        %v744 = vpop.permute.xlu0 %743
        %s746 = sor.u32 256, 32
        %747 = vbcast.lane.b32.xlu0 %v729, %s746
        %v748 = vpop.permute.xlu0 %747
        %s750 = sor.u32 256, 40
        %751 = vbcast.lane.b32.xlu0 %v729, %s750
        %v752 = vpop.permute.xlu0 %751
        %s754 = sor.u32 256, 48
        %755 = vbcast.lane.b32.xlu0 %v729, %s754
        %v756 = vpop.permute.xlu0 %755
        %s758 = sor.u32 256, 56
        %759 = vbcast.lane.b32.xlu0 %v729, %s758
        %v760 = vpop.permute.xlu0 %759
        %v761 = vmul.f32 %v243, %v732
        %v762 = vmul.f32 %v244, %v732
        %v763 = vmul.f32 %v245, %v736
        %v764 = vmul.f32 %v246, %v736
        %v765 = vmul.f32 %v247, %v740
        %v766 = vmul.f32 %v248, %v740
        %v767 = vmul.f32 %v249, %v744
        %v768 = vmul.f32 %v250, %v744
        %v769 = vmul.f32 %v251, %v748
        %v770 = vmul.f32 %v252, %v748
        %v771 = vmul.f32 %v253, %v752
        %v772 = vmul.f32 %v254, %v752
        %v773 = vmul.f32 %v255, %v756
        %v774 = vmul.f32 %v256, %v756
        %v775 = vmul.f32 %v257, %v760
        %v776 = vmul.f32 %v258, %v760
        %777 = vst [vmem:[%s242] sm:$0xff] %v761
        %778 = vst [vmem:[%s242 + $0x8] sm:$0xff] %v762
        %779 = vst [vmem:[%s242 + $0x10] sm:$0xff] %v763
        %780 = vst [vmem:[%s242 + $0x18] sm:$0xff] %v764
        %781 = vst [vmem:[%s242 + $0x20] sm:$0xff] %v765
        %782 = vst [vmem:[%s242 + $0x28] sm:$0xff] %v766
        %783 = vst [vmem:[%s242 + $0x30] sm:$0xff] %v767
        %784 = vst [vmem:[%s242 + $0x38] sm:$0xff] %v768
        %785 = vst [vmem:[%s242 + $0x40] sm:$0xff] %v769
        %786 = vst [vmem:[%s242 + $0x48] sm:$0xff] %v770
        %787 = vst [vmem:[%s242 + $0x50] sm:$0xff] %v771
        %788 = vst [vmem:[%s242 + $0x58] sm:$0xff] %v772
        %789 = vst [vmem:[%s242 + $0x60] sm:$0xff] %v773
        %790 = vst [vmem:[%s242 + $0x68] sm:$0xff] %v774
        %791 = vst [vmem:[%s242 + $0x70] sm:$0xff] %v775
        %792 = vst [vmem:[%s242 + $0x78] sm:$0xff] %v776
        %s793 = sand.u32 %s140, 1
        %s794 = scalar_lea.sflag [#allocation4], %s793
        %s795 = sand.u32 %s140, 1
        %s796 = smul.addr %s795, 128
        %s797 = scalar_lea.vmem [#allocation5], %s796
        // Predicated region
        $region45: #{tpu_custom_call.1} parent=39 // pred_check
          %p798 = pneg %p150
        $region46: #{tpu_custom_call.1} parent=39 // pred_check_branch
          %800 = sbr.rel (%p798) target = $region48
        $region47: #{tpu_custom_call.1} parent=39 // pred_region
          %s802 = ssub.s32 2048, 2048
          %803 = vsyncadd %s794, %s802
          %s804 = smul.addr %s22, 16
          %s805 = smul.addr %s804, 128
          %s806 = scalar_lea.hbm %s5, %s805
          %s807 = sshll.u32 %s797, 4
          %s808 = int_to_ptr.vmem [resolvable:$true] %s807
          %813 = dma.vmem_to_hbm [thread:$0]  %s808, 2048, %s806, %s794, 256, 256, 16
        $region48: #{tpu_custom_call.1} parent=39 // pred_fallthru
          _
      $region40: #{tpu_custom_call.1} parent=5 // pred_fallthru
        _
      %p814 = scmp.le.s32.totalorder 2, %s17
      // Predicated region
      $region49: #{tpu_custom_call.1} parent=5 // pred_check
        %p815 = pneg %p814
      $region50: #{tpu_custom_call.1} parent=5 // pred_check_branch
        %817 = sbr.rel (%p815) target = $region52
      $region51: #{tpu_custom_call.1} parent=5 // pred_region
        %s818 = ssub.s32 %s17, 2
        // Predicated region
        $region53: #{tpu_custom_call.1} parent=51 // pred_check
          %p819 = pneg %p156
        $region54: #{tpu_custom_call.1} parent=51 // pred_check_branch
          %821 = sbr.rel (%p819) target = $region56
        $region55: #{tpu_custom_call.1} parent=51 // pred_region
          %s822 = sand.u32 %s141, 1
          %s823 = scalar_lea.sflag [#allocation4], %s822
          %s824 = sand.u32 %s141, 1
          %s825 = smul.addr %s824, 128
          %s826 = scalar_lea.vmem [#allocation5], %s825
          %827 = dma.done %s823, 2048
        $region56: #{tpu_custom_call.1} parent=51 // pred_fallthru
          _
      $region52: #{tpu_custom_call.1} parent=5 // pred_fallthru
        _
    $region6: #{tpu_custom_call.1} parent=1 // loop_footer
      %s21 = sadd.s32 1, %s17
    $region7: #{tpu_custom_call.1} parent=1 // loop_footer_branch
      %16 = sbr.rel target = $region3
    $region8: #{tpu_custom_call.1} parent=1 // loop_exit
      _
    %828 = vsyncpa [#allocation3], 1
    %s829 = scalar_lea.sflag [#allocation3], 1
    %830 = vsyncpa %s829, 1
    %831 = vsyncpa [#allocation4], 1
    %s832 = scalar_lea.sflag [#allocation4], 1
    %833 = vsyncpa %s832, 1

</llo_original>
